<compile_context>
chip_gen: v5e
topology: v5e:2x2
jax: 0.10.0
libtpu: 0.0.40
codegen_flags: <defaults>
</compile_context>

<pallas_src>
import functools

import jax
import jax.numpy as jnp
from jax import lax
from jax.experimental import pallas as pl
from jax.experimental.pallas import tpu as pltpu


def _round_up(v, m):
    return (v + m - 1) // m * m


def _col_mask(n_cols, period, positions):
    """(1, n_cols) bool mask, True where (col % period) is in `positions`."""
    col = lax.broadcasted_iota(jnp.int32, (1, n_cols), 1) % period
    mask = None
    for p in positions:
        eq = col == p
        mask = eq if mask is None else (mask | eq)
    return mask


def basefunc_kernel(x_ref, w_ref, b_ref, out_ref, *,
                    n1, n2, basefuncs_1ary, basefuncs_2ary):
    k1 = len(basefuncs_1ary)
    k2 = len(basefuncs_2ary)

    # MXU matmul + bias (f32 accumulate).
    node = (jnp.dot(x_ref[...], w_ref[...],
                    preferred_element_type=jnp.float32)
            + b_ref[...])                       # (TB, n_w) f32

    z = node[:, :n1]                            # (TB, n1)
    z1 = node[:, n1:n1 + n2]                    # (TB, n2)
    z2 = node[:, n1 + n2:n1 + 2 * n2]           # (TB, n2)

    # ---- 1-ary block: id / sin / cos, selected by static column masks ----
    id_pos = [p for p, v in enumerate(basefuncs_1ary) if v == 0]
    sin_pos = [p for p, v in enumerate(basefuncs_1ary) if v == 1]
    cos_needed = (len(id_pos) + len(sin_pos)) < k1   # torch fallthrough -> cos

    if not sin_pos and not cos_needed:
        fn1 = z                                  # identity-only: no transcendentals
    else:
        if sin_pos and cos_needed:
            trig = jnp.where(_col_mask(n1, k1, sin_pos), jnp.sin(z), jnp.cos(z))
        elif sin_pos:
            trig = jnp.sin(z)
        else:
            trig = jnp.cos(z)
        fn1 = jnp.where(_col_mask(n1, k1, id_pos), z, trig) if id_pos else trig

    # ---- 2-ary block: id(z1) / z1 * z2 ----
    id2_pos = [p for p, v in enumerate(basefuncs_2ary) if v == 0]
    mul_needed = len(id2_pos) < k2
    if not mul_needed:
        fn2 = z1
    elif not id2_pos:
        fn2 = z1 * z2
    else:
        fn2 = jnp.where(_col_mask(n2, k2, id2_pos), z1, z1 * z2)

    # Store directly into disjoint column ranges (no concat intermediate).
    out_ref[:, :n1] = fn1.astype(out_ref.dtype)
    out_ref[:, n1:n1 + n2] = fn2.astype(out_ref.dtype)


def base_func_layer(x, W, b, basefuncs_1ary, basefuncs_2ary, n_per_base,
                    *, block_batch=512):
    """x: (B, n_in) -> (B, (K1 + K2) * n_per_base), matching BaseFuncLayer.forward."""
    x = jnp.asarray(x, jnp.float32)
    W = jnp.asarray(W, jnp.float32)
    b = jnp.asarray(b, jnp.float32)

    B, n_in = x.shape
    k1, k2 = len(basefuncs_1ary), len(basefuncs_2ary)
    n1 = n_per_base * k1
    n2 = n_per_base * k2
    n_w = n1 + 2 * n2
    out_features = n1 + n2
    assert W.shape == (n_in, n_w)
    assert b.shape == (n_w,)

    # Batch tile: multiple of 8 sublanes, capped at block_batch.
    tb = min(_round_up(block_batch, 8), _round_up(B, 8))
    b_pad = _round_up(B, tb)
    if b_pad != B:
        x = jnp.pad(x, ((0, b_pad - B), (0, 0)))
    grid = (pl.cdiv(b_pad, tb),)

    kernel = functools.partial(
        basefunc_kernel, n1=n1, n2=n2,
        basefuncs_1ary=tuple(int(v) for v in basefuncs_1ary),
        basefuncs_2ary=tuple(int(v) for v in basefuncs_2ary))

    out = pl.pallas_call(
        kernel,
        out_shape=jax.ShapeDtypeStruct((b_pad, out_features), jnp.float32),
        grid=grid,
        in_specs=[
            pl.BlockSpec((tb, n_in), lambda i: (i, 0)),      # x: batch-tiled
            pl.BlockSpec((n_in, n_w), lambda i: (0, 0)),     # W: resident
            pl.BlockSpec((1, n_w), lambda i: (0, 0)),        # b: resident
        ],
        out_specs=pl.BlockSpec((tb, out_features), lambda i: (i, 0)),
        compiler_params=pltpu.CompilerParams(
            dimension_semantics=("parallel",)),
    )(x, W, b.reshape(1, n_w))

    return out[:B] if b_pad != B else out


def reference_forward(x, W, b, basefuncs_1ary, basefuncs_2ary, n_per_base):
    """Pure-JAX reference matching the PyTorch forward, for validation."""
    k1, k2 = len(basefuncs_1ary), len(basefuncs_2ary)
    n1 = n_per_base * k1
    n2 = n_per_base * k2
    idx1 = jnp.tile(jnp.asarray(basefuncs_1ary, jnp.float32), n_per_base)
    idx2 = jnp.tile(jnp.asarray(basefuncs_2ary, jnp.float32), n_per_base)
    node = x @ W + b
    z, z1, z2 = node[:, :n1], node[:, n1:n1 + n2], node[:, n1 + n2:]
    fn1 = jnp.where(idx1 == 0, z, jnp.where(idx1 == 1, jnp.sin(z), jnp.cos(z)))
    fn2 = jnp.where(idx2 == 0, z1, z1 * z2)
    return jnp.concatenate([fn1, fn2], axis=1)


if __name__ == "__main__":
    # Module configuration (defaults: all basefuncs enabled).
    in_features = 16
    n_per_base = 4
    basefuncs_1ary = [0, 1, 2]
    basefuncs_2ary = [0, 1]
    n_w = (len(basefuncs_1ary) + 2 * len(basefuncs_2ary)) * n_per_base   # 28

    batch = 20   # not a multiple of the batch tile -> exercises padding + grid

    key = jax.random.PRNGKey(0)
    k_x, k_w = jax.random.split(key)

    W = jax.random.normal(k_w, (in_features, n_w), dtype=jnp.float32)
    b = jnp.zeros((n_w,), dtype=jnp.float32)
    x = jax.random.normal(k_x, (batch, in_features), dtype=jnp.float32)

    # Small batch tile (8 rows) so the demo exercises a multi-step grid;
    # production callers keep the default block_batch=512.
    out = base_func_layer(x, W, b, basefuncs_1ary, basefuncs_2ary,
                          n_per_base, block_batch=8)
    out = jax.block_until_ready(out)

    ref = reference_forward(x, W, b, basefuncs_1ary, basefuncs_2ary, n_per_base)
    assert out.shape == (batch,
                         (len(basefuncs_1ary) + len(basefuncs_2ary)) * n_per_base)
    assert jnp.allclose(out, ref, atol=1e-5, rtol=1e-5)

    print("KERNEL_OK")
</pallas_src>

<mosaic_0001>
module attributes {stable_mosaic.version = 11 : i64} {
  func.func @basefunc_kernel(%arg0: i32, %arg1: memref<8x16xf32, #tpu.memory_space<vmem>>, %arg2: memref<16x28xf32, #tpu.memory_space<vmem>>, %arg3: memref<1x28xf32, #tpu.memory_space<vmem>>, %arg4: memref<8x20xf32, #tpu.memory_space<vmem>>) attributes {dimension_semantics = [#tpu.dimension_semantics<parallel>], iteration_bounds = array<i64: 3>, scalar_prefetch = 0 : i64, scratch_operands = 0 : i64, tpu.core_type = #tpu.core_type<tc>, window_params = [{transform_indices = @transform_0, window_bounds = array<i64: 8, 16>}, {pipeline_mode = #tpu.pipeline_mode<synchronous>, transform_indices = @transform_1, window_bounds = array<i64: 16, 28>}, {pipeline_mode = #tpu.pipeline_mode<synchronous>, transform_indices = @transform_2, window_bounds = array<i64: 1, 28>}, {transform_indices = @transform_3, window_bounds = array<i64: 8, 20>}]} {
    %c0 = arith.constant 0 : index
    %c0_0 = arith.constant 0 : index
    %0 = vector.load %arg1[%c0, %c0_0] : memref<8x16xf32, #tpu.memory_space<vmem>>, vector<8x16xf32>
    %c0_1 = arith.constant 0 : index
    %c0_2 = arith.constant 0 : index
    %1 = vector.load %arg2[%c0_1, %c0_2] : memref<16x28xf32, #tpu.memory_space<vmem>>, vector<16x28xf32>
    %cst = arith.constant dense<0.000000e+00> : vector<8x28xf32>
    %2 = tpu.matmul %0, %1, %cst {dimension_numbers = #tpu.dot_dimension_numbers<[1], [0], [0], [1], [0, 0, 1, 1], [], []>} : vector<8x16xf32>, vector<16x28xf32>, vector<8x28xf32> -> vector<8x28xf32>
    %c0_3 = arith.constant 0 : index
    %c0_4 = arith.constant 0 : index
    %3 = vector.load %arg3[%c0_3, %c0_4] : memref<1x28xf32, #tpu.memory_space<vmem>>, vector<1x28xf32>
    %4 = vector.broadcast %3 : vector<1x28xf32> to vector<8x28xf32>
    %5 = arith.addf %2, %4 : vector<8x28xf32>
    %6 = vector.extract_strided_slice %5 {offsets = [0, 0], sizes = [8, 12], strides = [1, 1]} : vector<8x28xf32> to vector<8x12xf32>
    %7 = vector.extract_strided_slice %5 {offsets = [0, 12], sizes = [8, 8], strides = [1, 1]} : vector<8x28xf32> to vector<8x8xf32>
    %8 = vector.extract_strided_slice %5 {offsets = [0, 20], sizes = [8, 8], strides = [1, 1]} : vector<8x28xf32> to vector<8x8xf32>
    %9 = tpu.iota {dimensions = array<i32: 1>} : vector<1x12xi32>
    %c3_i32 = arith.constant 3 : i32
    %c0_i32 = arith.constant 0 : i32
    %10 = arith.cmpi eq, %c3_i32, %c0_i32 : i32
    %c1_i32 = arith.constant 1 : i32
    %11 = arith.select %10, %c1_i32, %c3_i32 : i32
    %12 = vector.broadcast %11 : i32 to vector<1x12xi32>
    %13 = arith.remsi %9, %12 : vector<1x12xi32>
    %c0_i32_5 = arith.constant 0 : i32
    %14 = vector.broadcast %c0_i32_5 : i32 to vector<1x12xi32>
    %15 = arith.cmpi ne, %13, %14 : vector<1x12xi32>
    %c0_i32_6 = arith.constant 0 : i32
    %16 = vector.broadcast %c0_i32_6 : i32 to vector<1x12xi32>
    %17 = arith.cmpi slt, %13, %16 : vector<1x12xi32>
    %c0_i32_7 = arith.constant 0 : i32
    %18 = arith.cmpi slt, %11, %c0_i32_7 : i32
    %19 = vector.broadcast %18 : i1 to vector<1x12xi1>
    %20 = vector.broadcast %19 : vector<1x12xi1> to vector<1x12xi1>
    %21 = arith.xori %17, %20 : vector<1x12xi1>
    %22 = arith.andi %21, %15 : vector<1x12xi1>
    %23 = vector.broadcast %11 : i32 to vector<1x12xi32>
    %24 = arith.addi %13, %23 : vector<1x12xi32>
    %25 = arith.select %22, %24, %13 : vector<1x12xi1>, vector<1x12xi32>
    %c1_i32_8 = arith.constant 1 : i32
    %26 = vector.broadcast %c1_i32_8 : i32 to vector<1x12xi32>
    %27 = arith.cmpi eq, %25, %26 : vector<1x12xi32>
    %28 = math.sin %6 : vector<8x12xf32>
    %29 = math.cos %6 : vector<8x12xf32>
    %30 = vector.shape_cast %27 : vector<1x12xi1> to vector<1x12xi1>
    %31 = vector.broadcast %30 : vector<1x12xi1> to vector<8x12xi1>
    %32 = arith.select %31, %28, %29 : vector<8x12xi1>, vector<8x12xf32>
    %33 = tpu.iota {dimensions = array<i32: 1>} : vector<1x12xi32>
    %c3_i32_9 = arith.constant 3 : i32
    %c0_i32_10 = arith.constant 0 : i32
    %34 = arith.cmpi eq, %c3_i32_9, %c0_i32_10 : i32
    %c1_i32_11 = arith.constant 1 : i32
    %35 = arith.select %34, %c1_i32_11, %c3_i32_9 : i32
    %36 = vector.broadcast %35 : i32 to vector<1x12xi32>
    %37 = arith.remsi %33, %36 : vector<1x12xi32>
    %c0_i32_12 = arith.constant 0 : i32
    %38 = vector.broadcast %c0_i32_12 : i32 to vector<1x12xi32>
    %39 = arith.cmpi ne, %37, %38 : vector<1x12xi32>
    %c0_i32_13 = arith.constant 0 : i32
    %40 = vector.broadcast %c0_i32_13 : i32 to vector<1x12xi32>
    %41 = arith.cmpi slt, %37, %40 : vector<1x12xi32>
    %c0_i32_14 = arith.constant 0 : i32
    %42 = arith.cmpi slt, %35, %c0_i32_14 : i32
    %43 = vector.broadcast %42 : i1 to vector<1x12xi1>
    %44 = vector.broadcast %43 : vector<1x12xi1> to vector<1x12xi1>
    %45 = arith.xori %41, %44 : vector<1x12xi1>
    %46 = arith.andi %45, %39 : vector<1x12xi1>
    %47 = vector.broadcast %35 : i32 to vector<1x12xi32>
    %48 = arith.addi %37, %47 : vector<1x12xi32>
    %49 = arith.select %46, %48, %37 : vector<1x12xi1>, vector<1x12xi32>
    %c0_i32_15 = arith.constant 0 : i32
    %50 = vector.broadcast %c0_i32_15 : i32 to vector<1x12xi32>
    %51 = arith.cmpi eq, %49, %50 : vector<1x12xi32>
    %52 = vector.shape_cast %51 : vector<1x12xi1> to vector<1x12xi1>
    %53 = vector.broadcast %52 : vector<1x12xi1> to vector<8x12xi1>
    %54 = arith.select %53, %6, %32 : vector<8x12xi1>, vector<8x12xf32>
    %55 = tpu.iota {dimensions = array<i32: 1>} : vector<1x8xi32>
    %c2_i32 = arith.constant 2 : i32
    %c0_i32_16 = arith.constant 0 : i32
    %56 = arith.cmpi eq, %c2_i32, %c0_i32_16 : i32
    %c1_i32_17 = arith.constant 1 : i32
    %57 = arith.select %56, %c1_i32_17, %c2_i32 : i32
    %58 = vector.broadcast %57 : i32 to vector<1x8xi32>
    %59 = arith.remsi %55, %58 : vector<1x8xi32>
    %c0_i32_18 = arith.constant 0 : i32
    %60 = vector.broadcast %c0_i32_18 : i32 to vector<1x8xi32>
    %61 = arith.cmpi ne, %59, %60 : vector<1x8xi32>
    %c0_i32_19 = arith.constant 0 : i32
    %62 = vector.broadcast %c0_i32_19 : i32 to vector<1x8xi32>
    %63 = arith.cmpi slt, %59, %62 : vector<1x8xi32>
    %c0_i32_20 = arith.constant 0 : i32
    %64 = arith.cmpi slt, %57, %c0_i32_20 : i32
    %65 = vector.broadcast %64 : i1 to vector<1x8xi1>
    %66 = vector.broadcast %65 : vector<1x8xi1> to vector<1x8xi1>
    %67 = arith.xori %63, %66 : vector<1x8xi1>
    %68 = arith.andi %67, %61 : vector<1x8xi1>
    %69 = vector.broadcast %57 : i32 to vector<1x8xi32>
    %70 = arith.addi %59, %69 : vector<1x8xi32>
    %71 = arith.select %68, %70, %59 : vector<1x8xi1>, vector<1x8xi32>
    %c0_i32_21 = arith.constant 0 : i32
    %72 = vector.broadcast %c0_i32_21 : i32 to vector<1x8xi32>
    %73 = arith.cmpi eq, %71, %72 : vector<1x8xi32>
    %74 = arith.mulf %7, %8 : vector<8x8xf32>
    %75 = vector.shape_cast %73 : vector<1x8xi1> to vector<1x8xi1>
    %76 = vector.broadcast %75 : vector<1x8xi1> to vector<8x8xi1>
    %77 = arith.select %76, %7, %74 : vector<8x8xi1>, vector<8x8xf32>
    %c0_22 = arith.constant 0 : index
    %c0_23 = arith.constant 0 : index
    %78 = vector.load %arg4[%c0_22, %c0_23] : memref<8x20xf32, #tpu.memory_space<vmem>>, vector<8x12xf32>
    tpu.vector_store %arg4[%c0_22, %c0_23], %54 {strides = array<i32>} : memref<8x20xf32, #tpu.memory_space<vmem>>, vector<8x12xf32>,
    %c0_24 = arith.constant 0 : index
    %c12 = arith.constant 12 : index
    %79 = vector.load %arg4[%c0_24, %c12] : memref<8x20xf32, #tpu.memory_space<vmem>>, vector<8x8xf32>
    tpu.vector_store %arg4[%c0_24, %c12], %77 {strides = array<i32>} : memref<8x20xf32, #tpu.memory_space<vmem>>, vector<8x8xf32>,
    return
  }
  func.func @transform_0(%arg0: i32) -> (i32, i32) {
    %c0_i32 = arith.constant 0 : i32
    %c0_i32_0 = arith.constant 0 : i32
    return %arg0, %c0_i32 : i32, i32
  }
  func.func @transform_1(%arg0: i32) -> (i32, i32) {
    %c0_i32 = arith.constant 0 : i32
    %c0_i32_0 = arith.constant 0 : i32
    %c0_i32_1 = arith.constant 0 : i32
    return %c0_i32, %c0_i32_0 : i32, i32
  }
  func.func @transform_2(%arg0: i32) -> (i32, i32) {
    %c0_i32 = arith.constant 0 : i32
    %c0_i32_0 = arith.constant 0 : i32
    %c0_i32_1 = arith.constant 0 : i32
    return %c0_i32, %c0_i32_0 : i32, i32
  }
  func.func @transform_3(%arg0: i32) -> (i32, i32) {
    %c0_i32 = arith.constant 0 : i32
    %c0_i32_0 = arith.constant 0 : i32
    return %arg0, %c0_i32 : i32, i32
  }
}

</mosaic_0001>

<llo_original>
// kernel: tpu_custom_call.1
$region0: #{tpu_custom_call.1}
  #allocation0 [shape = 'u32[]', space=smem, size = 0x4, offset = 0x4, fixed_abs, tag = 'smem constant byte address 0x4 - core index']
  #allocation1 [shape = 'u32[72,128]{1,0:T(1,128)}', space=vmem, size = 0x9000, scoped, tag = 'internal scratch']
  %s0 = inlined_call_operand.vmem [shape: f32[24,16], index: 0, kind: input, shape index: {}]
  %s1 = inlined_call_operand.vmem [shape: f32[16,28], index: 1, kind: input, shape index: {}]
  %s2 = inlined_call_operand.vmem [shape: f32[1,28], index: 2, kind: input, shape index: {}]
  %s3 = inlined_call_operand.hbm [shape: f32[24,20], index: 3, kind: output, shape index: {}]
  %s4 = sld [smem:[#allocation0]]
  $region45: #{tpu_custom_call.1} parent=0
    _
  %s6 = ssub.s32 1, %s4
  %s7 = scalar_select 0, %s6, %s4
  $region1: #{tpu_custom_call.1} parent=0
    #allocation2 [shape = 'u8[8192]{0}', space=vmem, size = 0x2000, scoped, tag = 'output window, operand 0']
    #allocation3 [shape = 's32[2]{0}', space=sflag, size = 0x8, scoped, tag = 'scoped memory for tpu_custom_call.1']
    %8 = vsyncpa [#allocation3], 0
    %s9 = scalar_lea.sflag [#allocation3], 1
    %10 = vsyncpa %s9, 0
    loop: start=0, step=1, limit=5
    $region2: #{tpu_custom_call.1} parent=1 // loop_pre_header
      _
    $region3: #{tpu_custom_call.1} parent=1 // loop_header
      %s12 = sphi 0, %s16
      %p13 = scmp.ge.s32.totalorder %s12, 5
      %s22 = sphi 0, %s24
      %s25 = sphi 0, %s22
      %s26 = sphi 0, %s25
      %s42 = sphi 0, %s26
      %s46 = sphi 0, %s46
      %s48 = sphi 0, %s46
      %s49 = sphi 0, %s48
      %s63 = sphi 0, %s49
      %s67 = sphi 0, %s67
      %s69 = sphi 0, %s67
      %s70 = sphi 0, %s69
      %s84 = sphi 0, %s70
      %s90 = sphi 0, %s92
      %s93 = sphi 0, %s90
      %s94 = sphi 0, %s93
      %s110 = sphi 0, %s94
    $region4: #{tpu_custom_call.1} parent=1 // loop_header_branch
      %15 = sbr.rel (%p13) target = $region8
    $region5: #{tpu_custom_call.1} parent=1 // loop_body
      %s17 = ssub.s32 %s12, 1
      %s18 = ssub.s32 %s12, 2
      %s19 = sadd.s32 %s12, 1
      %s20 = ssub.s32 %s12, %s19
      %p21 = scmp.eq.s32.totalorder %s20, 0
      %s23 = sadd.s32 %s22, 1
      %s24 = scalar_select %p21, %s22, %s23
      %p27 = pneg %p21
      %p28 = scmp.eq.s32.totalorder %s12, 2
      %p29 = por %p27, %p28
      %p30 = scmp.ne.s32.totalorder %s22, %s25
      %p31 = scmp.eq.s32.totalorder %s12, 0
      %p32 = por %p30, %p31
      %p33 = scmp.ne.s32.totalorder %s22, %s25
      %p34 = scmp.eq.s32.totalorder %s17, 2
      %p35 = por %p33, %p34
      %p36 = scmp.ne.s32.totalorder %s25, %s26
      %p37 = scmp.eq.s32.totalorder %s17, 0
      %p38 = por %p36, %p37
      %p39 = scmp.ne.s32.totalorder %s25, %s26
      %p40 = scmp.eq.s32.totalorder %s18, 2
      %p41 = por %p39, %p40
      %p43 = scmp.ne.s32.totalorder %s26, %s42
      %p44 = scmp.eq.s32.totalorder %s18, 0
      %p45 = por %p43, %p44
      %s47 = sadd.s32 %s46, 1
      %p50 = scmp.eq.s32.totalorder %s12, 2
      %p51 = scmp.ne.s32.totalorder %s46, %s48
      %p52 = scmp.eq.s32.totalorder %s12, 0
      %p53 = por %p51, %p52
      %p54 = scmp.ne.s32.totalorder %s46, %s48
      %p55 = scmp.eq.s32.totalorder %s17, 2
      %p56 = por %p54, %p55
      %p57 = scmp.ne.s32.totalorder %s48, %s49
      %p58 = scmp.eq.s32.totalorder %s17, 0
      %p59 = por %p57, %p58
      %p60 = scmp.ne.s32.totalorder %s48, %s49
      %p61 = scmp.eq.s32.totalorder %s18, 2
      %p62 = por %p60, %p61
      %p64 = scmp.ne.s32.totalorder %s49, %s63
      %p65 = scmp.eq.s32.totalorder %s18, 0
      %p66 = por %p64, %p65
      %s68 = sadd.s32 %s67, 1
      %p71 = scmp.eq.s32.totalorder %s12, 2
      %p72 = scmp.ne.s32.totalorder %s67, %s69
      %p73 = scmp.eq.s32.totalorder %s12, 0
      %p74 = por %p72, %p73
      %p75 = scmp.ne.s32.totalorder %s67, %s69
      %p76 = scmp.eq.s32.totalorder %s17, 2
      %p77 = por %p75, %p76
      %p78 = scmp.ne.s32.totalorder %s69, %s70
      %p79 = scmp.eq.s32.totalorder %s17, 0
      %p80 = por %p78, %p79
      %p81 = scmp.ne.s32.totalorder %s69, %s70
      %p82 = scmp.eq.s32.totalorder %s18, 2
      %p83 = por %p81, %p82
      %p85 = scmp.ne.s32.totalorder %s70, %s84
      %p86 = scmp.eq.s32.totalorder %s18, 0
      %p87 = por %p85, %p86
      %s88 = ssub.s32 %s12, %s19
      %p89 = scmp.eq.s32.totalorder %s88, 0
      %s91 = sadd.s32 %s90, 1
      %s92 = scalar_select %p89, %s90, %s91
      %p95 = pneg %p89
      %p96 = scmp.eq.s32.totalorder %s12, 2
      %p97 = por %p95, %p96
      %p98 = scmp.ne.s32.totalorder %s90, %s93
      %p99 = scmp.eq.s32.totalorder %s12, 0
      %p100 = por %p98, %p99
      %p101 = scmp.ne.s32.totalorder %s90, %s93
      %p102 = scmp.eq.s32.totalorder %s17, 2
      %p103 = por %p101, %p102
      %p104 = scmp.ne.s32.totalorder %s93, %s94
      %p105 = scmp.eq.s32.totalorder %s17, 0
      %p106 = por %p104, %p105
      %p107 = scmp.ne.s32.totalorder %s93, %s94
      %p108 = scmp.eq.s32.totalorder %s18, 2
      %p109 = por %p107, %p108
      %p111 = scmp.ne.s32.totalorder %s94, %s110
      %p112 = scmp.eq.s32.totalorder %s18, 0
      %p113 = por %p111, %p112
      %p114 = scmp.le.s32.totalorder 1, %s12
      %p115 = scmp.lt.s32.totalorder %s12, 4
      %p116 = pnand %p114, %p115
      %p117 = pneg %p116
      // Predicated region
      $region9: #{tpu_custom_call.1} parent=5 // pred_check
        _
      $region10: #{tpu_custom_call.1} parent=5 // pred_check_branch
        %119 = sbr.rel (%p116) target = $region12
      $region11: #{tpu_custom_call.1} parent=5 // pred_region
        %s120 = ssub.s32 %s12, 1
        // Predicated region
        $region13: #{tpu_custom_call.1} parent=11 // pred_check
          %p121 = pneg %p59
        $region14: #{tpu_custom_call.1} parent=11 // pred_check_branch
          %123 = sbr.rel (%p121) target = $region16
        $region15: #{tpu_custom_call.1} parent=11 // pred_region
          _
        $region16: #{tpu_custom_call.1} parent=11 // pred_fallthru
          _
        // Predicated region
        $region17: #{tpu_custom_call.1} parent=11 // pred_check
          %p124 = pneg %p80
        $region18: #{tpu_custom_call.1} parent=11 // pred_check_branch
          %126 = sbr.rel (%p124) target = $region20
        $region19: #{tpu_custom_call.1} parent=11 // pred_region
          _
        $region20: #{tpu_custom_call.1} parent=11 // pred_fallthru
          _
      $region12: #{tpu_custom_call.1} parent=5 // pred_fallthru
        _
      %p127 = scmp.lt.s32.totalorder %s12, 3
      // Predicated region
      $region21: #{tpu_custom_call.1} parent=5 // pred_check
        %p128 = pneg %p127
      $region22: #{tpu_custom_call.1} parent=5 // pred_check_branch
        %130 = sbr.rel (%p128) target = $region24
      $region23: #{tpu_custom_call.1} parent=5 // pred_region
        // Predicated region
        $region25: #{tpu_custom_call.1} parent=23 // pred_check
          %p131 = pneg %p32
        $region26: #{tpu_custom_call.1} parent=23 // pred_check_branch
          %133 = sbr.rel (%p131) target = $region28
        $region27: #{tpu_custom_call.1} parent=23 // pred_region
          %p134 = scmp.lt.s32.totalorder %s12, 2
          %s135 = scalar_select %p134, %s12, 2
          %s136 = smul.addr %s135, 8
          %s137 = scalar_lea.vmem %s0, %s136
        $region28: #{tpu_custom_call.1} parent=23 // pred_fallthru
          _
      $region24: #{tpu_custom_call.1} parent=5 // pred_fallthru
        _
      %p138 = scmp.le.s32.totalorder 1, %s12
      %p139 = scmp.lt.s32.totalorder %s12, 4
      %p140 = pnand %p138, %p139
      %p141 = pneg %p140
      // Predicated region
      $region29: #{tpu_custom_call.1} parent=5 // pred_check
        _
      $region30: #{tpu_custom_call.1} parent=5 // pred_check_branch
        %143 = sbr.rel (%p140) target = $region32
      $region31: #{tpu_custom_call.1} parent=5 // pred_region
        %s144 = ssub.s32 %s12, 1
        %p145 = scmp.lt.s32.totalorder %s17, 2
        %s146 = scalar_select %p145, %s17, 2
        %s147 = smul.addr %s146, 8
        %s148 = scalar_lea.vmem %s0, %s147
        %p149 = pneg %p38
        %p150 = pneg %p35
        %p151 = pneg %p59
        %p152 = pneg %p56
        %p153 = pneg %p80
        %p154 = pneg %p77
        %p155 = pneg %p106
        %p156 = pneg %p103
        %s157 = sand.u32 %s93, 1
        %s158 = scalar_lea.sflag [#allocation3], %s157
        %s159 = sand.u32 %s93, 1
        %s160 = smul.addr %s159, 8
        %s161 = scalar_lea.vmem [#allocation2], %s160
        %p162 = scmp.lt.s32.totalorder %s17, 2
        %s163 = scalar_select %p162, %s17, 2
        %s164 = smul.addr %s163, 8
        %s165 = scalar_lea.vmem %s0, %s164
        %v166 = vld [vmem:[%s165] sm:$0xff]
        %v167 = vld [vmem:[%s1] sm:$0xff]
        %v168 = vld [vmem:[%s1 + $0x8] sm:$0xff]
        %v169 = vld [vmem:[%s2] sm:$0x1]
        %v171 = vperm.slane %v169, 0
        %vm173 = vcmask 130048
        %v175 = vsel %vm173, %v166, 0
        %177 = vmatpush.msra.mxu0 0.0
        %178 = vmatpush.msra.mxu0 0.0
        %179 = vmatpush.msra.mxu0 0.0
        %180 = vmatpush.msra.mxu0 0.0
        %181 = vmatpush.msra.mxu0 0.0
        %182 = vmatpush.msra.mxu0 0.0
        %183 = vmatpush.msra.mxu0 0.0
        %184 = vmatpush.msra.mxu0 0.0
        %185 = vmatpush.msra.mxu0 0.0
        %186 = vmatpush.msra.mxu0 0.0
        %187 = vmatpush.msra.mxu0 0.0
        %188 = vmatpush.msra.mxu0 0.0
        %189 = vmatpush.msra.mxu0 0.0
        %190 = vmatpush.msra.mxu0 0.0
        %191 = vmatpush.msra.mxu0 %v168
        %192 = vmatpush.msra.mxu0 %v167
        %193 = vmatmul.f32.gmra.mxu0 %v175
        %v194 = vpop.f32.mrf.mxu0
        %v195 = vadd.f32 %v171, %v194
        %196 = vdwg.mxu0
        %v197 = vlaneseq
        %v198 = vand.u32 %v197, 127
        %vm199 = vcmp.lt.s32.totalorder %v198, 0
        %v200 = vsub.s32 0, %v198
        %v201 = vsel %vm199, %v200, %v198
        %v202 = vand.u32 %v201, 65535
        %v203 = vshrl.u32 %v201, 16
        %v205 = vmul.u32 %v202, 43691
        %v206 = vmul.u32 %v202, 43690
        %v207 = vmul.u32 %v203, 43691
        %v208 = vmul.u32 %v203, 43690
        %v209 = vshll.u32 %v206, 16
        %v210 = vshrl.u32 %v206, 16
        %v211 = vshll.u32 %v207, 16
        %v212 = vshrl.u32 %v207, 16
        %vm213 = vc.u32 %v205, %v209
        %v214 = vsel %vm213, 1, 0
        %v215 = vadd.s32 %v205, %v209
        %v216 = vadd.s32 %v208, %v214
        %vm217 = vc.u32 %v215, %v211
        %v218 = vsel %vm217, 1, 0
        %v219 = vadd.s32 %v215, %v211
        %v220 = vadd.s32 %v216, %v218
        %v221 = vadd.s32 %v220, %v210
        %v222 = vadd.s32 %v221, %v212
        %v223 = vshrl.u32 %v222, 1
        %v224 = vmul.u32 %v223, 3
        %v225 = vsub.s32 %v201, %v224
        %v226 = vsub.s32 0, %v225
        %v227 = vsel %vm199, %v226, %v225
        %vm228 = vcmp.ne.s32.totalorder %v227, 0
        %vm229 = vcmp.lt.s32.totalorder %v227, 0
        %vm230 = vmand %vm229, %vm228
        %v231 = vadd.s32 %v227, 3
        %v232 = vsel %vm230, %v231, %v227
        %vm233 = vcmp.eq.s32.totalorder %v232, 1
        %v234 = vand.u32 2147483647, %v195
        %vm235 = vcmp.le.f32.partialorder %v234, 0.7853982
        %vm236 = vcmp.lt.s32.totalorder %v195, 0
        %v237 = vand.u32 %v195, 2139095040
        %v238 = vshrl.u32 %v237, 23
        %v239 = vsub.s32 %v238, 127
        %v240 = vand.u32 2147483647, %v195
        %v241 = vand.u32 %v240, 8388607
        %v242 = vor.u32 %v241, 8388608
        %v243 = vsub.s32 0, %v242
        %v244 = vadd.s32 %v239, 1
        %vm245 = vcmp.gt.s32.totalorder %v244, 0
        %v246 = vsel %vm245, %v244, 0
        %v247 = vshrl.u32 %v246, 5
        %v248 = vand.u32 %v246, 31
        %v249 = vsub.s32 32, %v248
        %v250 = vshrl.u32 683565275, %v249
        %v251 = vshll.u32 683565275, %v248
        %v252 = vshrl.u32 2475754826, %v249
        %v253 = vor.u32 %v251, %v252
        %v254 = vshll.u32 2475754826, %v248
        %v255 = vshrl.u32 2131351028, %v249
        %v256 = vor.u32 %v254, %v255
        %v257 = vshll.u32 2131351028, %v248
        %v258 = vshrl.u32 2102212464, %v249
        %v259 = vor.u32 %v257, %v258
        %v260 = vshll.u32 2102212464, %v248
        %v261 = vshrl.u32 920167782, %v249
        %v262 = vor.u32 %v260, %v261
        %v263 = vshll.u32 920167782, %v248
        %v264 = vshrl.u32 1326507024, %v249
        %v265 = vor.u32 %v263, %v264
        %vm266 = vcmp.lt.s32.totalorder %v247, 1
        %vm267 = vcmp.lt.s32.totalorder %v247, 2
        %vm268 = vcmp.lt.s32.totalorder %v247, 3
        %vm269 = vcmp.lt.s32.totalorder %v247, 4
        %v270 = vsel %vm266, %v250, %v253
        %v271 = vsel %vm269, %v259, 2102212464
        %v272 = vsel %vm268, %v256, %v271
        %v273 = vsel %vm267, %v270, %v272
        %v274 = vsel %vm266, %v253, %v256
        %v275 = vsel %vm269, %v262, 920167782
        %v276 = vsel %vm268, %v259, %v275
        %v277 = vsel %vm267, %v274, %v276
        %v278 = vsel %vm266, %v256, %v259
        %v279 = vsel %vm269, %v265, 1326507024
        %v280 = vsel %vm268, %v262, %v279
        %v281 = vsel %vm267, %v278, %v280
        %v282 = vshll.u32 %v242, 8
        %v283 = vand.u32 %v282, 65535
        %v284 = vshrl.u32 %v282, 16
        %v285 = vand.u32 %v281, 65535
        %v286 = vshrl.u32 %v281, 16
        %v287 = vmul.u32 %v283, %v285
        %v288 = vmul.u32 %v283, %v286
        %v289 = vmul.u32 %v284, %v285
        %v290 = vmul.u32 %v284, %v286
        %v291 = vshll.u32 %v288, 16
        %v292 = vshrl.u32 %v288, 16
        %v293 = vshll.u32 %v289, 16
        %v294 = vshrl.u32 %v289, 16
        %vm295 = vc.u32 %v287, %v291
        %v296 = vsel %vm295, 1, 0
        %v297 = vadd.s32 %v287, %v291
        %v298 = vadd.s32 %v290, %v296
        %vm299 = vc.u32 %v297, %v293
        %v300 = vsel %vm299, 1, 0
        %v301 = vadd.s32 %v297, %v293
        %v302 = vadd.s32 %v298, %v300
        %v303 = vadd.s32 %v302, %v292
        %v304 = vadd.s32 %v303, %v294
        %v305 = vand.u32 %v282, 65535
        %v306 = vshrl.u32 %v282, 16
        %v307 = vand.u32 %v277, 65535
        %v308 = vshrl.u32 %v277, 16
        %v309 = vmul.u32 %v305, %v307
        %v310 = vmul.u32 %v305, %v308
        %v311 = vmul.u32 %v306, %v307
        %v312 = vmul.u32 %v306, %v308
        %v313 = vshll.u32 %v310, 16
        %v314 = vshrl.u32 %v310, 16
        %v315 = vshll.u32 %v311, 16
        %v316 = vshrl.u32 %v311, 16
        %vm317 = vc.u32 %v309, %v313
        %v318 = vsel %vm317, 1, 0
        %v319 = vadd.s32 %v309, %v313
        %v320 = vadd.s32 %v312, %v318
        %vm321 = vc.u32 %v319, %v315
        %v322 = vsel %vm321, 1, 0
        %v323 = vadd.s32 %v319, %v315
        %v324 = vadd.s32 %v320, %v322
        %v325 = vadd.s32 %v324, %v314
        %v326 = vadd.s32 %v325, %v316
        %v327 = vmul.u32 %v282, %v273
        %v328 = vadd.s32 %v304, %v323
        %vm329 = vc.u32 %v304, %v323
        %v330 = vadd.s32 %v326, 1
        %v331 = vsel %vm329, %v330, %v326
        %v332 = vadd.s32 %v327, %v331
        %v333 = vadd.s32 %v332, 536870912
        %v334 = vshrl.u32 %v333, 30
        %v335 = vshll.u32 %v334, 30
        %v336 = vsub.s32 %v332, %v335
        %vm337 = vcmp.lt.s32.totalorder %v336, 0
        %v338 = vsub.s32 0, %v336
        %v339 = vsel %vm337, %v338, %v336
        %v340 = vclz %v339
        %v341 = vsub.s32 %v340, 2
        %vm342 = vcmp.gt.s32.totalorder 0, %v341
        %v343 = vsel %vm342, 0, %v341
        %v344 = vsub.s32 32, %v343
        %v345 = vshll.u32 %v336, %v343
        %v346 = vshrl.u32 %v328, %v344
        %v347 = vor.u32 %v345, %v346
        %v348 = vsub.s32 4294967266, %v343
        %v349 = vadd.s32 %v348, 127
        %v350 = vshll.u32 %v349, 23
        %v351 = vor.u32 4788187, %v350
        %v352 = vand.u32 2147483647, %v351
        %v354 = vcvt.s32.f32 %v347
        %v355 = vmul.f32 %v354, %v352
        %v356 = vxor.u32 %v355, 2147483648
        %v357 = vsel %vm236, %v356, %v355
        %v358 = vsub.s32 4, %v334
        %v359 = vsel %vm236, %v358, %v334
        %v360 = vsel %vm235, %v195, %v357
        %v361 = vsel %vm235, 0, %v359
        %v362 = vmul.f32 %v360, %v360
        %v363 = vmul.f32 %v362, -0.001358992
        %v364 = vadd.f32 %v363, 0.041655596
        %v365 = vmul.f32 %v362, %v364
        %v366 = vadd.f32 %v365, -0.4999988
        %v367 = vmul.f32 %v362, %v366
        %v368 = vadd.f32 1.0, %v367
        %v369 = vmul.f32 %v360, %v360
        %v370 = vmul.f32 %v369, -0.00019511016
        %v371 = vadd.f32 %v370, 0.008332121
        %v372 = vmul.f32 %v369, %v371
        %v373 = vadd.f32 %v372, -0.16666654
        %v374 = vmul.f32 %v369, %v373
        %v375 = vadd.f32 %v374, 1.0
        %v376 = vmul.f32 %v375, %v360
        %vm377 = vweird.f32 %v195
        %v378 = vadd.s32 %v361, 3
        %v379 = vand.u32 %v378, 3
        %vm380 = vcmp.lt.s32.totalorder %v379, 2
        %vm381 = vcmp.eq.s32.totalorder %v379, 0
        %v382 = vxor.u32 %v376, 2147483648
        %v383 = vsel %vm381, %v368, %v382
        %vm384 = vcmp.eq.s32.totalorder %v379, 2
        %v385 = vxor.u32 %v368, 2147483648
        %v386 = vsel %vm384, %v385, %v376
        %v387 = vsel %vm380, %v383, %v386
        %v388 = vsel %vm377, nan, %v387
        %v389 = vand.u32 2147483647, %v195
        %vm390 = vcmp.le.f32.partialorder %v389, 0.7853982
        %vm391 = vcmp.lt.s32.totalorder %v195, 0
        %v392 = vand.u32 %v195, 2139095040
        %v393 = vshrl.u32 %v392, 23
        %v394 = vsub.s32 %v393, 127
        %v395 = vand.u32 2147483647, %v195
        %v396 = vand.u32 %v395, 8388607
        %v397 = vor.u32 %v396, 8388608
        %v398 = vsub.s32 0, %v397
        %v399 = vadd.s32 %v394, 1
        %vm400 = vcmp.gt.s32.totalorder %v399, 0
        %v401 = vsel %vm400, %v399, 0
        %v402 = vshrl.u32 %v401, 5
        %v403 = vand.u32 %v401, 31
        %v404 = vsub.s32 32, %v403
        %v405 = vshrl.u32 683565275, %v404
        %v406 = vshll.u32 683565275, %v403
        %v407 = vshrl.u32 2475754826, %v404
        %v408 = vor.u32 %v406, %v407
        %v409 = vshll.u32 2475754826, %v403
        %v410 = vshrl.u32 2131351028, %v404
        %v411 = vor.u32 %v409, %v410
        %v412 = vshll.u32 2131351028, %v403
        %v413 = vshrl.u32 2102212464, %v404
        %v414 = vor.u32 %v412, %v413
        %v415 = vshll.u32 2102212464, %v403
        %v416 = vshrl.u32 920167782, %v404
        %v417 = vor.u32 %v415, %v416
        %v418 = vshll.u32 920167782, %v403
        %v419 = vshrl.u32 1326507024, %v404
        %v420 = vor.u32 %v418, %v419
        %vm421 = vcmp.lt.s32.totalorder %v402, 1
        %vm422 = vcmp.lt.s32.totalorder %v402, 2
        %vm423 = vcmp.lt.s32.totalorder %v402, 3
        %vm424 = vcmp.lt.s32.totalorder %v402, 4
        %v425 = vsel %vm421, %v405, %v408
        %v426 = vsel %vm424, %v414, 2102212464
        %v427 = vsel %vm423, %v411, %v426
        %v428 = vsel %vm422, %v425, %v427
        %v429 = vsel %vm421, %v408, %v411
        %v430 = vsel %vm424, %v417, 920167782
        %v431 = vsel %vm423, %v414, %v430
        %v432 = vsel %vm422, %v429, %v431
        %v433 = vsel %vm421, %v411, %v414
        %v434 = vsel %vm424, %v420, 1326507024
        %v435 = vsel %vm423, %v417, %v434
        %v436 = vsel %vm422, %v433, %v435
        %v437 = vshll.u32 %v397, 8
        %v438 = vand.u32 %v437, 65535
        %v439 = vshrl.u32 %v437, 16
        %v440 = vand.u32 %v436, 65535
        %v441 = vshrl.u32 %v436, 16
        %v442 = vmul.u32 %v438, %v440
        %v443 = vmul.u32 %v438, %v441
        %v444 = vmul.u32 %v439, %v440
        %v445 = vmul.u32 %v439, %v441
        %v446 = vshll.u32 %v443, 16
        %v447 = vshrl.u32 %v443, 16
        %v448 = vshll.u32 %v444, 16
        %v449 = vshrl.u32 %v444, 16
        %vm450 = vc.u32 %v442, %v446
        %v451 = vsel %vm450, 1, 0
        %v452 = vadd.s32 %v442, %v446
        %v453 = vadd.s32 %v445, %v451
        %vm454 = vc.u32 %v452, %v448
        %v455 = vsel %vm454, 1, 0
        %v456 = vadd.s32 %v452, %v448
        %v457 = vadd.s32 %v453, %v455
        %v458 = vadd.s32 %v457, %v447
        %v459 = vadd.s32 %v458, %v449
        %v460 = vand.u32 %v437, 65535
        %v461 = vshrl.u32 %v437, 16
        %v462 = vand.u32 %v432, 65535
        %v463 = vshrl.u32 %v432, 16
        %v464 = vmul.u32 %v460, %v462
        %v465 = vmul.u32 %v460, %v463
        %v466 = vmul.u32 %v461, %v462
        %v467 = vmul.u32 %v461, %v463
        %v468 = vshll.u32 %v465, 16
        %v469 = vshrl.u32 %v465, 16
        %v470 = vshll.u32 %v466, 16
        %v471 = vshrl.u32 %v466, 16
        %vm472 = vc.u32 %v464, %v468
        %v473 = vsel %vm472, 1, 0
        %v474 = vadd.s32 %v464, %v468
        %v475 = vadd.s32 %v467, %v473
        %vm476 = vc.u32 %v474, %v470
        %v477 = vsel %vm476, 1, 0
        %v478 = vadd.s32 %v474, %v470
        %v479 = vadd.s32 %v475, %v477
        %v480 = vadd.s32 %v479, %v469
        %v481 = vadd.s32 %v480, %v471
        %v482 = vmul.u32 %v437, %v428
        %v483 = vadd.s32 %v459, %v478
        %vm484 = vc.u32 %v459, %v478
        %v485 = vadd.s32 %v481, 1
        %v486 = vsel %vm484, %v485, %v481
        %v487 = vadd.s32 %v482, %v486
        %v488 = vadd.s32 %v487, 536870912
        %v489 = vshrl.u32 %v488, 30
        %v490 = vshll.u32 %v489, 30
        %v491 = vsub.s32 %v487, %v490
        %vm492 = vcmp.lt.s32.totalorder %v491, 0
        %v493 = vsub.s32 0, %v491
        %v494 = vsel %vm492, %v493, %v491
        %v495 = vclz %v494
        %v496 = vsub.s32 %v495, 2
        %vm497 = vcmp.gt.s32.totalorder 0, %v496
        %v498 = vsel %vm497, 0, %v496
        %v499 = vsub.s32 32, %v498
        %v500 = vshll.u32 %v491, %v498
        %v501 = vshrl.u32 %v483, %v499
        %v502 = vor.u32 %v500, %v501
        %v503 = vsub.s32 4294967266, %v498
        %v504 = vadd.s32 %v503, 127
        %v505 = vshll.u32 %v504, 23
        %v506 = vor.u32 4788187, %v505
        %v507 = vand.u32 2147483647, %v506
        %v509 = vcvt.s32.f32 %v502
        %v510 = vmul.f32 %v509, %v507
        %v511 = vxor.u32 %v510, 2147483648
        %v512 = vsel %vm391, %v511, %v510
        %v513 = vsub.s32 4, %v489
        %v514 = vsel %vm391, %v513, %v489
        %v515 = vsel %vm390, %v195, %v512
        %v516 = vsel %vm390, 0, %v514
        %v517 = vmul.f32 %v515, %v515
        %v518 = vmul.f32 %v517, -0.001358992
        %v519 = vadd.f32 %v518, 0.041655596
        %v520 = vmul.f32 %v517, %v519
        %v521 = vadd.f32 %v520, -0.4999988
        %v522 = vmul.f32 %v517, %v521
        %v523 = vadd.f32 1.0, %v522
        %v524 = vmul.f32 %v515, %v515
        %v525 = vmul.f32 %v524, -0.00019511016
        %v526 = vadd.f32 %v525, 0.008332121
        %v527 = vmul.f32 %v524, %v526
        %v528 = vadd.f32 %v527, -0.16666654
        %v529 = vmul.f32 %v524, %v528
        %v530 = vadd.f32 %v529, 1.0
        %v531 = vmul.f32 %v530, %v515
        %vm532 = vweird.f32 %v195
        %v533 = vand.u32 %v516, 3
        %vm534 = vcmp.lt.s32.totalorder %v533, 2
        %vm535 = vcmp.eq.s32.totalorder %v533, 0
        %v536 = vxor.u32 %v531, 2147483648
        %v537 = vsel %vm535, %v523, %v536
        %vm538 = vcmp.eq.s32.totalorder %v533, 2
        %v539 = vxor.u32 %v523, 2147483648
        %v540 = vsel %vm538, %v539, %v531
        %v541 = vsel %vm534, %v537, %v540
        %v542 = vsel %vm532, nan, %v541
        %v543 = vsel %vm233, 1, 0
        %vm544 = vcmp.eq.s32.totalorder %v543, 1
        %v545 = vsel %vm544, %v388, %v542
        %vm546 = vcmp.eq.s32.totalorder %v232, 0
        %v547 = vsel %vm546, 1, 0
        %vm548 = vcmp.eq.s32.totalorder %v547, 1
        %v549 = vsel %vm548, %v195, %v545
        %vm550 = vcmp.lt.s32.totalorder %v198, 0
        %v551 = vsub.s32 0, %v198
        %v552 = vsel %vm550, %v551, %v198
        %v553 = vshrl.u32 %v552, 1
        %v554 = vand.u32 %v552, 1
        %v555 = vsub.s32 0, %v554
        %v556 = vsel %vm550, %v555, %v554
        %vm557 = vcmp.ne.s32.totalorder %v556, 0
        %vm558 = vcmp.lt.s32.totalorder %v556, 0
        %vm559 = vmand %vm558, %vm557
        %v560 = vadd.s32 %v556, 2
        %v561 = vsel %vm559, %v560, %v556
        %vm562 = vcmp.eq.s32.totalorder %v561, 0
        %564 = vrot.lane.b32.xlu0 %v195, 120
        %v565 = vpop.permute.xlu0 %564
        %v567 = vmul.f32 %v195, %v565
        %v568 = vsel %vm562, 1, 0
        %vm569 = vcmp.eq.s32.totalorder %v568, 1
        %570 = vrot.lane.b32.xlu0 %v195, 116
        %v571 = vpop.permute.xlu0 %570
        %574 = vrot.lane.b32.xlu0 %v567, 116
        %v575 = vpop.permute.xlu0 %574
        %v577 = vsel %vm569, %v571, %v575
        %vm578 = vcmask 97280
        %579 = vst.msk [vmem:[%s161] sm:$0xff] %vm578, %v549
        %581 = vrot.lane.b32.xlu0 %v577, 12
        %v582 = vpop.permute.xlu0 %581
        %vm584 = vcmask 162912
        %585 = vst.msk [vmem:[%s161] sm:$0xff] %vm584, %v582
        %s586 = sand.u32 %s93, 1
        %s587 = scalar_lea.sflag [#allocation3], %s586
        %s588 = sand.u32 %s93, 1
        %s589 = smul.addr %s588, 8
        %s590 = scalar_lea.vmem [#allocation2], %s589
        // Predicated region
        $region33: #{tpu_custom_call.1} parent=31 // pred_check
          %p591 = pneg %p103
        $region34: #{tpu_custom_call.1} parent=31 // pred_check_branch
          %593 = sbr.rel (%p591) target = $region36
        $region35: #{tpu_custom_call.1} parent=31 // pred_region
          %595 = vsyncadd %s587, 0
          %s596 = smul.addr %s17, 8
          %s597 = scalar_lea.hbm %s3, %s596
          %s599 = sshll.u32 %s590, 4
          %s600 = int_to_ptr.vmem [resolvable:$true] %s599
          %s601 = sshll.u32 %s597, 4
          %s602 = int_to_ptr.hbm [resolvable:$true] %s601
          %604 = dma.vmem_to_hbm [thread:$0]  %s600, 128, %s602, %s587
        $region36: #{tpu_custom_call.1} parent=31 // pred_fallthru
          _
      $region32: #{tpu_custom_call.1} parent=5 // pred_fallthru
        _
      %p605 = scmp.le.s32.totalorder 2, %s12
      // Predicated region
      $region37: #{tpu_custom_call.1} parent=5 // pred_check
        %p606 = pneg %p605
      $region38: #{tpu_custom_call.1} parent=5 // pred_check_branch
        %608 = sbr.rel (%p606) target = $region40
      $region39: #{tpu_custom_call.1} parent=5 // pred_region
        %s609 = ssub.s32 %s12, 2
        // Predicated region
        $region41: #{tpu_custom_call.1} parent=39 // pred_check
          %p610 = pneg %p109
        $region42: #{tpu_custom_call.1} parent=39 // pred_check_branch
          %612 = sbr.rel (%p610) target = $region44
        $region43: #{tpu_custom_call.1} parent=39 // pred_region
          %s613 = sand.u32 %s94, 1
          %s614 = scalar_lea.sflag [#allocation3], %s613
          %s615 = sand.u32 %s94, 1
          %s616 = smul.addr %s615, 8
          %s617 = scalar_lea.vmem [#allocation2], %s616
          %619 = dma.done %s614, 128
        $region44: #{tpu_custom_call.1} parent=39 // pred_fallthru
          _
      $region40: #{tpu_custom_call.1} parent=5 // pred_fallthru
        _
    $region6: #{tpu_custom_call.1} parent=1 // loop_footer
      %s16 = sadd.s32 1, %s12
    $region7: #{tpu_custom_call.1} parent=1 // loop_footer_branch
      %11 = sbr.rel target = $region3
    $region8: #{tpu_custom_call.1} parent=1 // loop_exit
      _
    %620 = vsyncpa [#allocation3], 1
    %s621 = scalar_lea.sflag [#allocation3], 1
    %622 = vsyncpa %s621, 1

</llo_original>
